<compile_context>
chip_gen: v5e
topology: v5e:2x2
jax: 0.10.0
libtpu: 0.0.40
codegen_flags: <defaults>
</compile_context>

<pallas_src>
import jax
import jax.numpy as jnp
from jax.experimental import pallas as pl
from jax.experimental.pallas import tpu as pltpu


def label_mlp_kernel(x_ref, w1_ref, b1_ref, w2_ref, b2_ref, o_ref):
    # x_ref:  (tm, h)   gathered feature rows (streamed)
    # w1_ref: (h, H)    lin1 weight, (in, out) layout (resident)
    # b1_ref: (1, H)    lin1 bias (resident)
    # w2_ref: (H, Kp)   lin2 weight, label dim padded to a lane multiple
    # b2_ref: (1, Kp)   lin2 bias (zeros in padded lanes)
    # o_ref:  (tm, Kp)  output tile (lane-dense)
    hidden = jnp.dot(x_ref[...], w1_ref[...],
                     preferred_element_type=jnp.float32) + b1_ref[...]
    # Dropout is identity at inference time (no-op here).
    hidden = jnp.tanh(hidden)
    out = jnp.dot(hidden, w2_ref[...],
                  preferred_element_type=jnp.float32) + b2_ref[...]
    o_ref[...] = out.astype(o_ref.dtype)


def _round_up(x, m):
    return ((x + m - 1) // m) * m


def label_predictor_2d(feat, heads, w1, b1, w2, b2, *, tm=1024):
    """feat: (n, L, L, h), heads: (n, L-1) int -> (n, L-1, k)."""
    assert tm % 8 == 0, "row tile must respect the 8-sublane granule"
    n, L, L2, h = feat.shape
    assert L == L2
    l = L - 1
    H = w1.shape[1]
    k = w2.shape[1]

    # ---- head gather (data-dependent indexing, done with XLA) -------------
    # TODO(synk): a fully fused in-kernel gather would need per-row manual
    # DMA via scalar prefetch; not worth it since it only moves n*l*h elems.
    f = feat[:, 1:, :, :]                                   # (n, l, L, h)
    idx = heads.astype(jnp.int32)[:, :, None, None]         # (n, l, 1, 1)
    x = jnp.take_along_axis(f, idx, axis=2)[:, :, 0, :]     # (n, l, h)

    M = n * l
    x = x.reshape(M, h)

    # ---- lane-dense output: pad the label dim on the tiny weights only ----
    Kp = _round_up(k, 128)
    if Kp != k:
        w2 = jnp.pad(w2, ((0, 0), (0, Kp - k)))
        b2 = jnp.pad(b2, ((0, 0), (0, Kp - k)))

    # ---- row tile: as large as possible, no row padding of x --------------
    # (If M <= tm a single full-extent block is used; otherwise the last
    #  block may be ragged and Pallas drops the OOB rows on store. For very
    #  large production h/H, re-derive the VMEM budget and set
    #  vmem_limit_bytes; at these sizes the defaults are ample.)
    tm_eff = M if M <= tm else tm
    grid = (pl.cdiv(M, tm_eff),)

    out = pl.pallas_call(
        label_mlp_kernel,
        out_shape=jax.ShapeDtypeStruct((M, Kp), feat.dtype),
        grid_spec=pltpu.PrefetchScalarGridSpec(
            num_scalar_prefetch=0,
            grid=grid,
            in_specs=[
                pl.BlockSpec((tm_eff, h), lambda i: (i, 0)),   # x rows (streamed)
                pl.BlockSpec((h, H), lambda i: (0, 0)),        # W1 (resident)
                pl.BlockSpec((1, H), lambda i: (0, 0)),        # b1 (resident)
                pl.BlockSpec((H, Kp), lambda i: (0, 0)),       # W2 (resident)
                pl.BlockSpec((1, Kp), lambda i: (0, 0)),       # b2 (resident)
            ],
            out_specs=pl.BlockSpec((tm_eff, Kp), lambda i: (i, 0)),
        ),
        compiler_params=pltpu.CompilerParams(
            dimension_semantics=("parallel",)),   # shards rows across v7x TCs
    )(x, w1, b1, w2, b2)

    return out[:, :k].reshape(n, l, k)


def init_params(key, n_feat, n_hidden, n_label, dtype=jnp.float32):
    """Deterministic synthetic parameters matching the module's shapes.

    Weights are stored in (in, out) layout so the kernel computes x @ W
    directly (nn.Linear stores (out, in); the transpose is init-time layout
    plumbing, not compute).
    """
    k1, k2, k3, k4 = jax.random.split(key, 4)
    w1 = jax.random.normal(k1, (n_feat, n_hidden), dtype) / jnp.sqrt(n_feat)
    b1 = jax.random.normal(k2, (1, n_hidden), dtype) * 0.01
    w2 = jax.random.normal(k3, (n_hidden, n_label), dtype) / jnp.sqrt(n_hidden)
    b2 = jax.random.normal(k4, (1, n_label), dtype) * 0.01
    return w1, b1, w2, b2


def reference_forward(feat, heads, w1, b1, w2, b2):
    f = feat[:, 1:, :, :]
    idx = heads.astype(jnp.int32)[:, :, None, None]
    x = jnp.take_along_axis(f, idx, axis=2)[:, :, 0, :]     # (n, l, h)
    hidden = jnp.tanh(x @ w1 + b1)
    return hidden @ w2 + b2                                  # (n, l, k)


if __name__ == "__main__":
    # batch, seq len (incl. root), n_feat, hidden_dim, n_label
    n, L, h, H, k = 2, 16, 32, 64, 32
    key = jax.random.PRNGKey(0)
    k_feat, k_heads, k_params = jax.random.split(key, 3)

    feat = jax.random.normal(k_feat, (n, L, L, h), jnp.float32)
    heads = jax.random.randint(k_heads, (n, L - 1), 0, L, dtype=jnp.int32)
    w1, b1, w2, b2 = init_params(k_params, h, H, k)

    out = label_predictor_2d(feat, heads, w1, b1, w2, b2)
    out = jax.block_until_ready(out)

    ref = reference_forward(feat, heads, w1, b1, w2, b2)
    assert out.shape == (n, L - 1, k), out.shape
    assert jnp.allclose(out, ref, atol=1e-3, rtol=1e-3), (
        float(jnp.max(jnp.abs(out - ref))))

    print("KERNEL_OK")
</pallas_src>

<mosaic_0001>
module attributes {stable_mosaic.version = 11 : i64} {
  func.func @label_mlp_kernel(%arg0: i32, %arg1: memref<30x32xf32, #tpu.memory_space<vmem>>, %arg2: memref<32x64xf32, #tpu.memory_space<vmem>>, %arg3: memref<1x64xf32, #tpu.memory_space<vmem>>, %arg4: memref<64x128xf32, #tpu.memory_space<vmem>>, %arg5: memref<1x128xf32, #tpu.memory_space<vmem>>, %arg6: memref<30x128xf32, #tpu.memory_space<vmem>>) attributes {dimension_semantics = [#tpu.dimension_semantics<parallel>], iteration_bounds = array<i64: 1>, scalar_prefetch = 0 : i64, scratch_operands = 0 : i64, tpu.core_type = #tpu.core_type<tc>, window_params = [{transform_indices = @transform_0, window_bounds = array<i64: 30, 32>}, {pipeline_mode = #tpu.pipeline_mode<synchronous>, transform_indices = @transform_1, window_bounds = array<i64: 32, 64>}, {pipeline_mode = #tpu.pipeline_mode<synchronous>, transform_indices = @transform_2, window_bounds = array<i64: 1, 64>}, {pipeline_mode = #tpu.pipeline_mode<synchronous>, transform_indices = @transform_3, window_bounds = array<i64: 64, 128>}, {pipeline_mode = #tpu.pipeline_mode<synchronous>, transform_indices = @transform_4, window_bounds = array<i64: 1, 128>}, {transform_indices = @transform_5, window_bounds = array<i64: 30, 128>}]} {
    %c0 = arith.constant 0 : index
    %c0_0 = arith.constant 0 : index
    %0 = vector.load %arg1[%c0, %c0_0] : memref<30x32xf32, #tpu.memory_space<vmem>>, vector<30x32xf32>
    %c0_1 = arith.constant 0 : index
    %c0_2 = arith.constant 0 : index
    %1 = vector.load %arg2[%c0_1, %c0_2] : memref<32x64xf32, #tpu.memory_space<vmem>>, vector<32x64xf32>
    %cst = arith.constant dense<0.000000e+00> : vector<30x64xf32>
    %2 = tpu.matmul %0, %1, %cst {dimension_numbers = #tpu.dot_dimension_numbers<[1], [0], [0], [1], [0, 0, 1, 1], [], []>} : vector<30x32xf32>, vector<32x64xf32>, vector<30x64xf32> -> vector<30x64xf32>
    %c0_3 = arith.constant 0 : index
    %c0_4 = arith.constant 0 : index
    %3 = vector.load %arg3[%c0_3, %c0_4] : memref<1x64xf32, #tpu.memory_space<vmem>>, vector<1x64xf32>
    %4 = vector.broadcast %3 : vector<1x64xf32> to vector<30x64xf32>
    %5 = arith.addf %2, %4 : vector<30x64xf32>
    %6 = math.tanh %5 : vector<30x64xf32>
    %c0_5 = arith.constant 0 : index
    %c0_6 = arith.constant 0 : index
    %7 = vector.load %arg4[%c0_5, %c0_6] : memref<64x128xf32, #tpu.memory_space<vmem>>, vector<64x128xf32>
    %cst_7 = arith.constant dense<0.000000e+00> : vector<30x128xf32>
    %8 = tpu.matmul %6, %7, %cst_7 {dimension_numbers = #tpu.dot_dimension_numbers<[1], [0], [0], [1], [0, 0, 1, 1], [], []>} : vector<30x64xf32>, vector<64x128xf32>, vector<30x128xf32> -> vector<30x128xf32>
    %c0_8 = arith.constant 0 : index
    %c0_9 = arith.constant 0 : index
    %9 = vector.load %arg5[%c0_8, %c0_9] : memref<1x128xf32, #tpu.memory_space<vmem>>, vector<1x128xf32>
    %10 = vector.broadcast %9 : vector<1x128xf32> to vector<30x128xf32>
    %11 = arith.addf %8, %10 : vector<30x128xf32>
    %c0_10 = arith.constant 0 : index
    %c0_11 = arith.constant 0 : index
    %12 = vector.load %arg6[%c0_10, %c0_11] : memref<30x128xf32, #tpu.memory_space<vmem>>, vector<30x128xf32>
    tpu.vector_store %arg6[%c0_10, %c0_11], %11 {strides = array<i32>} : memref<30x128xf32, #tpu.memory_space<vmem>>, vector<30x128xf32>,
    return
  }
  func.func @transform_0(%arg0: i32) -> (i32, i32) {
    %c0_i32 = arith.constant 0 : i32
    %c0_i32_0 = arith.constant 0 : i32
    return %arg0, %c0_i32 : i32, i32
  }
  func.func @transform_1(%arg0: i32) -> (i32, i32) {
    %c0_i32 = arith.constant 0 : i32
    %c0_i32_0 = arith.constant 0 : i32
    %c0_i32_1 = arith.constant 0 : i32
    return %c0_i32, %c0_i32_0 : i32, i32
  }
  func.func @transform_2(%arg0: i32) -> (i32, i32) {
    %c0_i32 = arith.constant 0 : i32
    %c0_i32_0 = arith.constant 0 : i32
    %c0_i32_1 = arith.constant 0 : i32
    return %c0_i32, %c0_i32_0 : i32, i32
  }
  func.func @transform_3(%arg0: i32) -> (i32, i32) {
    %c0_i32 = arith.constant 0 : i32
    %c0_i32_0 = arith.constant 0 : i32
    %c0_i32_1 = arith.constant 0 : i32
    return %c0_i32, %c0_i32_0 : i32, i32
  }
  func.func @transform_4(%arg0: i32) -> (i32, i32) {
    %c0_i32 = arith.constant 0 : i32
    %c0_i32_0 = arith.constant 0 : i32
    %c0_i32_1 = arith.constant 0 : i32
    return %c0_i32, %c0_i32_0 : i32, i32
  }
  func.func @transform_5(%arg0: i32) -> (i32, i32) {
    %c0_i32 = arith.constant 0 : i32
    %c0_i32_0 = arith.constant 0 : i32
    return %arg0, %c0_i32 : i32, i32
  }
}

</mosaic_0001>

<llo_original>
// kernel: tpu_custom_call.1
$region0: #{tpu_custom_call.1}
  #allocation0 [shape = 'u32[]', space=smem, size = 0x4, offset = 0x4, fixed_abs, tag = 'smem constant byte address 0x4 - core index']
  #allocation1 [shape = 'u32[72,128]{1,0:T(1,128)}', space=vmem, size = 0x9000, scoped, tag = 'internal scratch']
  %s0 = inlined_call_operand.hbm [shape: f32[30,32], index: 0, kind: input, shape index: {}]
  %s1 = inlined_call_operand.hbm [shape: f32[32,64], index: 1, kind: input, shape index: {}]
  %s2 = inlined_call_operand.vmem [shape: f32[1,64], index: 2, kind: input, shape index: {}]
  %s3 = inlined_call_operand.hbm [shape: f32[64,128], index: 3, kind: input, shape index: {}]
  %s4 = inlined_call_operand.vmem [shape: f32[1,128], index: 4, kind: input, shape index: {}]
  %s5 = inlined_call_operand.hbm [shape: f32[30,128], index: 5, kind: output, shape index: {}]
  %s6 = sld [smem:[#allocation0]]
  $region42: #{tpu_custom_call.1} parent=0
    _
  %s8 = ssub.s32 1, %s6
  %s9 = scalar_select 0, %s8, %s6
  $region1: #{tpu_custom_call.1} parent=0
    #allocation2 [shape = 'u8[16384]{0}', space=vmem, size = 0x4000, scoped, tag = 'input window, operand 0, single buffered']
    #allocation3 [shape = 's32[1]{0}', space=sflag, size = 0x4, scoped, tag = 'scoped memory for tpu_custom_call.1']
    #allocation4 [shape = 's32[1]{0}', space=sflag, size = 0x4, scoped, tag = 'scoped memory for tpu_custom_call.1']
    #allocation5 [shape = 'u8[16384]{0}', space=vmem, size = 0x4000, scoped, tag = 'input window, operand 1, single buffered']
    #allocation6 [shape = 's32[1]{0}', space=sflag, size = 0x4, scoped, tag = 'scoped memory for tpu_custom_call.1']
    #allocation7 [shape = 'u8[32768]{0}', space=vmem, size = 0x8000, scoped, tag = 'input window, operand 3, single buffered']
    #allocation8 [shape = 'u8[16384]{0}', space=vmem, size = 0x4000, scoped, tag = 'output window, operand 0, single buffered']
    %10 = vsyncpa [#allocation3], 0
    %11 = vsyncpa [#allocation6], 0
    %12 = vsyncpa [#allocation4], 0
    // Predicated region
    $region2: #{tpu_custom_call.1} parent=1 // pred_check
      _
    $region3: #{tpu_custom_call.1} parent=1 // pred_check_branch
      %14 = sbr.rel (0) target = $region5
    $region4: #{tpu_custom_call.1} parent=1 // pred_region
      %16 = vsyncadd [#allocation3], 0
      %s17 = sshll.u32 %s0, 4
      %s18 = int_to_ptr.hbm [resolvable:$true] %s17
      %s19 = sshll.u32 [#allocation2], 4
      %s20 = int_to_ptr.vmem [resolvable:$true] %s19
      %25 = dma.hbm_to_vmem [thread:$0]  %s18, 512, %s20, [#allocation3], 128, 128, 8
    $region5: #{tpu_custom_call.1} parent=1 // pred_fallthru
      _
    // Predicated region
    $region6: #{tpu_custom_call.1} parent=1 // pred_check
      _
    $region7: #{tpu_custom_call.1} parent=1 // pred_check_branch
      %27 = sbr.rel (0) target = $region9
    $region8: #{tpu_custom_call.1} parent=1 // pred_region
      %29 = vsyncadd [#allocation6], 0
      %s30 = sshll.u32 %s1, 4
      %s31 = int_to_ptr.hbm [resolvable:$true] %s30
      %s32 = sshll.u32 [#allocation5], 4
      %s33 = int_to_ptr.vmem [resolvable:$true] %s32
      %38 = dma.hbm_to_vmem [thread:$0]  %s31, 512, %s33, [#allocation6], 128, 128, 8
    $region9: #{tpu_custom_call.1} parent=1 // pred_fallthru
      _
    // Predicated region
    $region10: #{tpu_custom_call.1} parent=1 // pred_check
      _
    $region11: #{tpu_custom_call.1} parent=1 // pred_check_branch
      %40 = sbr.rel (0) target = $region13
    $region12: #{tpu_custom_call.1} parent=1 // pred_region
      _
    $region13: #{tpu_custom_call.1} parent=1 // pred_fallthru
      _
    // Predicated region
    $region14: #{tpu_custom_call.1} parent=1 // pred_check
      _
    $region15: #{tpu_custom_call.1} parent=1 // pred_check_branch
      %42 = sbr.rel (0) target = $region17
    $region16: #{tpu_custom_call.1} parent=1 // pred_region
      %44 = vsyncadd [#allocation6], 0
      %s45 = sshll.u32 %s3, 4
      %s46 = int_to_ptr.hbm [resolvable:$true] %s45
      %s47 = sshll.u32 [#allocation7], 4
      %s48 = int_to_ptr.vmem [resolvable:$true] %s47
      %53 = dma.hbm_to_vmem [thread:$0]  %s46, 1024, %s48, [#allocation6], 128, 128, 8
    $region17: #{tpu_custom_call.1} parent=1 // pred_fallthru
      _
    // Predicated region
    $region18: #{tpu_custom_call.1} parent=1 // pred_check
      _
    $region19: #{tpu_custom_call.1} parent=1 // pred_check_branch
      %55 = sbr.rel (0) target = $region21
    $region20: #{tpu_custom_call.1} parent=1 // pred_region
      _
    $region21: #{tpu_custom_call.1} parent=1 // pred_fallthru
      _
    // Predicated region
    $region22: #{tpu_custom_call.1} parent=1 // pred_check
      _
    $region23: #{tpu_custom_call.1} parent=1 // pred_check_branch
      %57 = sbr.rel (0) target = $region25
    $region24: #{tpu_custom_call.1} parent=1 // pred_region
      %59 = dma.done [#allocation3], 512
    $region25: #{tpu_custom_call.1} parent=1 // pred_fallthru
      _
    // Predicated region
    $region26: #{tpu_custom_call.1} parent=1 // pred_check
      _
    $region27: #{tpu_custom_call.1} parent=1 // pred_check_branch
      %61 = sbr.rel (0) target = $region29
    $region28: #{tpu_custom_call.1} parent=1 // pred_region
      %63 = dma.done [#allocation6], 512
    $region29: #{tpu_custom_call.1} parent=1 // pred_fallthru
      _
    // Predicated region
    $region30: #{tpu_custom_call.1} parent=1 // pred_check
      _
    $region31: #{tpu_custom_call.1} parent=1 // pred_check_branch
      %65 = sbr.rel (0) target = $region33
    $region32: #{tpu_custom_call.1} parent=1 // pred_region
      %67 = dma.done [#allocation6], 1024
    $region33: #{tpu_custom_call.1} parent=1 // pred_fallthru
      _
    %v68 = vld [vmem:[#allocation2] sm:$0xff]
    %v69 = vld [vmem:[#allocation2 + $0x8] sm:$0xff]
    %v70 = vld [vmem:[#allocation2 + $0x10] sm:$0xff]
    %v71 = vld [vmem:[#allocation2 + $0x18] sm:$0x3f]
    %v72 = vld [vmem:[#allocation5] sm:$0xff]
    %v73 = vld [vmem:[#allocation5 + $0x8] sm:$0xff]
    %v74 = vld [vmem:[#allocation5 + $0x10] sm:$0xff]
    %v75 = vld [vmem:[#allocation5 + $0x18] sm:$0xff]
    %v76 = vld [vmem:[%s2] sm:$0x1]
    %v78 = vperm.slane %v76, 0
    %vm80 = vcmask 261120
    %v82 = vsel %vm80, %v68, 0
    %v85 = vsel %vm80, %v69, 0
    %v88 = vsel %vm80, %v70, 0
    %v91 = vsel %vm80, %v71, 0
    %93 = vmatpush.msra.mxu0 0.0
    %94 = vmatpush.msra.mxu0 0.0
    %95 = vmatpush.msra.mxu0 0.0
    %96 = vmatpush.msra.mxu0 0.0
    %97 = vmatpush.msra.mxu0 0.0
    %98 = vmatpush.msra.mxu0 0.0
    %99 = vmatpush.msra.mxu0 0.0
    %100 = vmatpush.msra.mxu0 0.0
    %101 = vmatpush.msra.mxu0 0.0
    %102 = vmatpush.msra.mxu0 0.0
    %103 = vmatpush.msra.mxu0 0.0
    %104 = vmatpush.msra.mxu0 0.0
    %105 = vmatpush.msra.mxu0 %v75
    %106 = vmatpush.msra.mxu0 %v74
    %107 = vmatpush.msra.mxu0 %v73
    %108 = vmatpush.msra.mxu0 %v72
    %109 = vmatmul.f32.gmra.mxu0 %v82
    %v110 = vpop.f32.mrf.mxu0
    %v111 = vadd.f32 %v78, %v110
    %112 = vmatmul.f32.gmra.mxu0 %v85
    %v113 = vpop.f32.mrf.mxu0
    %v114 = vadd.f32 %v78, %v113
    %115 = vmatmul.f32.gmra.mxu0 %v88
    %v116 = vpop.f32.mrf.mxu0
    %v117 = vadd.f32 %v78, %v116
    %118 = vmatmul.f32.gmra.mxu0 %v91
    %v119 = vpop.f32.mrf.mxu0
    %v120 = vadd.f32 %v78, %v119
    %121 = vdwg.mxu0
    %v122 = vtanh.pop %v111
    %v123 = vtanh.pop %v114
    %v124 = vtanh.pop %v117
    %v125 = vtanh.pop %v120
    %v126 = vld [vmem:[#allocation7] sm:$0xff]
    %v127 = vld [vmem:[#allocation7 + $0x8] sm:$0xff]
    %v128 = vld [vmem:[#allocation7 + $0x10] sm:$0xff]
    %v129 = vld [vmem:[#allocation7 + $0x18] sm:$0xff]
    %v130 = vld [vmem:[#allocation7 + $0x20] sm:$0xff]
    %v131 = vld [vmem:[#allocation7 + $0x28] sm:$0xff]
    %v132 = vld [vmem:[#allocation7 + $0x30] sm:$0xff]
    %v133 = vld [vmem:[#allocation7 + $0x38] sm:$0xff]
    %v134 = vld [vmem:[%s4] sm:$0x1]
    %v136 = vperm.slane %v134, 0
    %vm138 = vcmask 523264
    %v140 = vsel %vm138, %v122, 0
    %v143 = vsel %vm138, %v123, 0
    %v146 = vsel %vm138, %v124, 0
    %v149 = vsel %vm138, %v125, 0
    %151 = vmatpush.msra.mxu0 0.0
    %152 = vmatpush.msra.mxu0 0.0
    %153 = vmatpush.msra.mxu0 0.0
    %154 = vmatpush.msra.mxu0 0.0
    %155 = vmatpush.msra.mxu0 0.0
    %156 = vmatpush.msra.mxu0 0.0
    %157 = vmatpush.msra.mxu0 0.0
    %158 = vmatpush.msra.mxu0 0.0
    %159 = vmatpush.msra.mxu0 %v133
    %160 = vmatpush.msra.mxu0 %v132
    %161 = vmatpush.msra.mxu0 %v131
    %162 = vmatpush.msra.mxu0 %v130
    %163 = vmatpush.msra.mxu0 %v129
    %164 = vmatpush.msra.mxu0 %v128
    %165 = vmatpush.msra.mxu0 %v127
    %166 = vmatpush.msra.mxu0 %v126
    %167 = vmatmul.f32.gmra.mxu0 %v140
    %v168 = vpop.f32.mrf.mxu0
    %v169 = vadd.f32 %v136, %v168
    %170 = vmatmul.f32.gmra.mxu0 %v143
    %v171 = vpop.f32.mrf.mxu0
    %v172 = vadd.f32 %v136, %v171
    %173 = vmatmul.f32.gmra.mxu0 %v146
    %v174 = vpop.f32.mrf.mxu0
    %v175 = vadd.f32 %v136, %v174
    %176 = vmatmul.f32.gmra.mxu0 %v149
    %v177 = vpop.f32.mrf.mxu0
    %v178 = vadd.f32 %v136, %v177
    %179 = vdwg.mxu0
    %180 = vst [vmem:[#allocation8] sm:$0xff] %v169
    %181 = vst [vmem:[#allocation8 + $0x8] sm:$0xff] %v172
    %182 = vst [vmem:[#allocation8 + $0x10] sm:$0xff] %v175
    %183 = vst [vmem:[#allocation8 + $0x18] sm:$0x3f] %v178
    // Predicated region
    $region34: #{tpu_custom_call.1} parent=1 // pred_check
      _
    $region35: #{tpu_custom_call.1} parent=1 // pred_check_branch
      %185 = sbr.rel (0) target = $region37
    $region36: #{tpu_custom_call.1} parent=1 // pred_region
      %187 = vsyncadd [#allocation4], 0
      %s188 = sshll.u32 [#allocation8], 4
      %s189 = int_to_ptr.vmem [resolvable:$true] %s188
      %s190 = sshll.u32 %s5, 4
      %s191 = int_to_ptr.hbm [resolvable:$true] %s190
      %196 = dma.vmem_to_hbm [thread:$0]  %s189, 512, %s191, [#allocation4], 128, 128, 8
    $region37: #{tpu_custom_call.1} parent=1 // pred_fallthru
      _
    // Predicated region
    $region38: #{tpu_custom_call.1} parent=1 // pred_check
      _
    $region39: #{tpu_custom_call.1} parent=1 // pred_check_branch
      %198 = sbr.rel (0) target = $region41
    $region40: #{tpu_custom_call.1} parent=1 // pred_region
      %200 = dma.done [#allocation4], 512
    $region41: #{tpu_custom_call.1} parent=1 // pred_fallthru
      _
    %201 = vsyncpa [#allocation3], 1
    %202 = vsyncpa [#allocation6], 1
    %203 = vsyncpa [#allocation4], 1

</llo_original>
